<compile_context>
chip_gen: v7x
topology: tpu7x:2x2x1
jax: 0.10.0
libtpu: 0.0.40
codegen_flags: <defaults>
</compile_context>

<pallas_src>
import functools
import math

import jax
import jax.numpy as jnp
from jax.experimental import pallas as pl
from jax.experimental.pallas import tpu as pltpu

_LN2 = math.log(2.0)
_TARGET_BLOCK_BYTES = 4 * 1024 * 1024  # ~4 MiB of input per grid step
_MAX_BLOCK_ROWS = 8192


def _laplace_nll_kernel(pred_ref, tgt_ref, partial_ref, *,
                        d: int, eps: float, tm: int, n_rows: int, need_mask: bool):
    # pred_ref: (tm, 2d) block of [loc | scale], tgt_ref: (tm, d), partial_ref: (8, d)
    pred = pred_ref[...].astype(jnp.float32)
    tgt = tgt_ref[...].astype(jnp.float32)

    loc = pred[:, :d]
    scale = jnp.maximum(pred[:, d:], eps)                 # clamp_(min=eps)

    # log(2*scale) + |t - loc| / scale, with the divide moved to the EUP reciprocal.
    nll = (jnp.log(scale) + _LN2) + jnp.abs(tgt - loc) * pl.reciprocal(scale, approx=False)

    if need_mask:
        # Tail block: rows >= n_rows are OOB-padded garbage; zero them via select.
        i = pl.program_id(0)
        row = i * tm + jax.lax.broadcasted_iota(jnp.int32, (tm, d), 0)
        nll = jnp.where(row < n_rows, nll, 0.0)

    # VPU-only partial reduction into a vreg-shaped slab (no per-step XLU / scalar chain).
    partial_ref[...] = jnp.sum(nll.reshape(tm // 8, 8, d), axis=0)


def laplace_nll_loss(pred: jax.Array, target: jax.Array,
                     eps: float = 1e-6, reduction: str = "mean",
                     block_rows: int | None = None) -> jax.Array:
    """Pallas implementation of LaplaceNLLLoss.forward (reduction='mean'|'sum')."""
    assert pred.shape[-1] % 2 == 0
    d = pred.shape[-1] // 2
    assert target.shape[-1] == d
    assert pred.shape[:-1] == target.shape[:-1]

    if reduction == "mean":
        pass
    elif reduction == "sum":
        pass
    else:
        # TODO(synk): reduction='none' would need an (N, D) elementwise output BlockSpec;
        # not wired here (module default is 'mean').
        raise ValueError(f"{reduction} is not a supported reduction in this kernel")

    # Layout-free reshapes only (row-major contiguous): no HBM copies of pred.
    pred2 = pred.reshape(-1, 2 * d)
    tgt2 = target.reshape(-1, d)
    n = pred2.shape[0]

    # Row tile: big enough to approach the HBM roofline, multiple of 8, capped;
    # grid uses cdiv and the kernel masks the padded tail rows.
    bytes_per_row = 2 * d * pred2.dtype.itemsize + d * tgt2.dtype.itemsize
    n_pad8 = ((n + 7) // 8) * 8
    rows_budget = max(8, (_TARGET_BLOCK_BYTES // bytes_per_row) // 8 * 8)
    tm = int(min(n_pad8, rows_budget, _MAX_BLOCK_ROWS))
    if block_rows is not None:
        tm = int(min(n_pad8, ((block_rows + 7) // 8) * 8))
    num_blocks = pl.cdiv(n, tm)
    need_mask = (num_blocks * tm) != n

    kernel = functools.partial(_laplace_nll_kernel, d=d, eps=float(eps),
                               tm=tm, n_rows=n, need_mask=need_mask)

    partials = pl.pallas_call(
        kernel,
        out_shape=jax.ShapeDtypeStruct((num_blocks * 8, d), jnp.float32),
        grid_spec=pltpu.PrefetchScalarGridSpec(
            num_scalar_prefetch=0,
            grid=(num_blocks,),
            in_specs=[
                pl.BlockSpec((tm, 2 * d), lambda i: (i, 0)),  # pred rows [loc | scale]
                pl.BlockSpec((tm, d), lambda i: (i, 0)),      # target rows
            ],
            out_specs=pl.BlockSpec((8, d), lambda i: (i, 0)),  # per-block partial slab
        ),
        compiler_params=pltpu.CompilerParams(
            dimension_semantics=("parallel",),      # each block writes its own partial
            vmem_limit_bytes=48 * 1024 * 1024,      # headroom for large double-buffered tiles
        ),
    )(pred2, tgt2)

    total = jnp.sum(partials, dtype=jnp.float32)
    if reduction == "mean":
        return total / float(n * d)
    return total


def _reference(pred, target, eps=1e-6, reduction="mean"):
    d = pred.shape[-1] // 2
    loc, scale = pred[..., :d], pred[..., d:]
    scale = jnp.maximum(scale, eps)
    nll = jnp.log(2.0 * scale) + jnp.abs(target - loc) / scale
    if reduction == "mean":
        return nll.mean()
    return nll.sum()


if __name__ == "__main__":
    key = jax.random.PRNGKey(0)
    k1, k2, k3, k4 = jax.random.split(key, 4)

    # pred: (batch=2, seq=8, 2*hidden=64) -> loc/scale each hidden=32
    pred = jax.random.normal(k1, (2, 8, 64), dtype=jnp.float32)
    target = jax.random.normal(k2, (2, 8, 32), dtype=jnp.float32)

    out_mean = jax.block_until_ready(laplace_nll_loss(pred, target, reduction="mean"))
    ref_mean = _reference(pred, target, reduction="mean")
    assert jnp.allclose(out_mean, ref_mean, rtol=1e-5, atol=1e-5), (out_mean, ref_mean)

    out_sum = jax.block_until_ready(laplace_nll_loss(pred, target, reduction="sum"))
    ref_sum = _reference(pred, target, reduction="sum")
    assert jnp.allclose(out_sum, ref_sum, rtol=1e-5, atol=1e-4), (out_sum, ref_sum)

    # Non-multiple-of-8 row count + forced small block -> exercises cdiv grid + tail mask.
    pred_b = jax.random.normal(k3, (3, 5, 64), dtype=jnp.float32)
    target_b = jax.random.normal(k4, (3, 5, 32), dtype=jnp.float32)
    out_b = jax.block_until_ready(
        laplace_nll_loss(pred_b, target_b, reduction="mean", block_rows=8))
    ref_b = _reference(pred_b, target_b, reduction="mean")
    assert jnp.allclose(out_b, ref_b, rtol=1e-5, atol=1e-5), (out_b, ref_b)

    print("KERNEL_OK")
</pallas_src>

<mosaic_0001>
module attributes {stable_mosaic.version = 11 : i64} {
  func.func @_laplace_nll_kernel(%arg0: i32, %arg1: memref<16x64xf32, #tpu.memory_space<vmem>>, %arg2: memref<16x32xf32, #tpu.memory_space<vmem>>, %arg3: memref<8x32xf32, #tpu.memory_space<vmem>>) attributes {dimension_semantics = [#tpu.dimension_semantics<parallel>], iteration_bounds = array<i64: 1>, scalar_prefetch = 0 : i64, scratch_operands = 0 : i64, tpu.core_type = #tpu.core_type<tc>, window_params = [{transform_indices = @transform_0, window_bounds = array<i64: 16, 64>}, {transform_indices = @transform_1, window_bounds = array<i64: 16, 32>}, {transform_indices = @transform_2, window_bounds = array<i64: 8, 32>}]} {
    %c0 = arith.constant 0 : index
    %c0_0 = arith.constant 0 : index
    %0 = vector.load %arg1[%c0, %c0_0] : memref<16x64xf32, #tpu.memory_space<vmem>>, vector<16x64xf32>
    %c0_1 = arith.constant 0 : index
    %c0_2 = arith.constant 0 : index
    %1 = vector.load %arg2[%c0_1, %c0_2] : memref<16x32xf32, #tpu.memory_space<vmem>>, vector<16x32xf32>
    %2 = vector.extract_strided_slice %0 {offsets = [0, 0], sizes = [16, 32], strides = [1, 1]} : vector<16x64xf32> to vector<16x32xf32>
    %3 = vector.extract_strided_slice %0 {offsets = [0, 32], sizes = [16, 32], strides = [1, 1]} : vector<16x64xf32> to vector<16x32xf32>
    %cst = arith.constant 9.99999997E-7 : f32
    %4 = vector.broadcast %cst : f32 to vector<16x32xf32>
    %5 = arith.maximumf %3, %4 : vector<16x32xf32>
    %6 = math.log %5 : vector<16x32xf32>
    %cst_3 = arith.constant 0.693147182 : f32
    %7 = vector.broadcast %cst_3 : f32 to vector<16x32xf32>
    %8 = arith.addf %6, %7 : vector<16x32xf32>
    %9 = arith.subf %1, %2 : vector<16x32xf32>
    %10 = math.absf %9 : vector<16x32xf32>
    %11 = tpu.reciprocal %5 : vector<16x32xf32> -> vector<16x32xf32>
    %12 = arith.mulf %10, %11 : vector<16x32xf32>
    %13 = arith.addf %8, %12 : vector<16x32xf32>
    %14 = vector.shape_cast %13 : vector<16x32xf32> to vector<2x8x32xf32>
    %cst_4 = arith.constant dense<0.000000e+00> : vector<8x32xf32>
    %15 = vector.multi_reduction <add>, %14, %cst_4 [0] : vector<2x8x32xf32> to vector<8x32xf32>
    %c0_5 = arith.constant 0 : index
    %c0_6 = arith.constant 0 : index
    %16 = vector.load %arg3[%c0_5, %c0_6] : memref<8x32xf32, #tpu.memory_space<vmem>>, vector<8x32xf32>
    tpu.vector_store %arg3[%c0_5, %c0_6], %15 {strides = array<i32>} : memref<8x32xf32, #tpu.memory_space<vmem>>, vector<8x32xf32>,
    return
  }
  func.func @transform_0(%arg0: i32) -> (i32, i32) {
    %c0_i32 = arith.constant 0 : i32
    %c0_i32_0 = arith.constant 0 : i32
    return %arg0, %c0_i32 : i32, i32
  }
  func.func @transform_1(%arg0: i32) -> (i32, i32) {
    %c0_i32 = arith.constant 0 : i32
    %c0_i32_0 = arith.constant 0 : i32
    return %arg0, %c0_i32 : i32, i32
  }
  func.func @transform_2(%arg0: i32) -> (i32, i32) {
    %c0_i32 = arith.constant 0 : i32
    %c0_i32_0 = arith.constant 0 : i32
    return %arg0, %c0_i32 : i32, i32
  }
}

</mosaic_0001>

<llo_original>
// kernel: tpu_custom_call.1
$region0: #{tpu_custom_call.1}
  #allocation0 [shape = 'u32[]', space=smem, size = 0x4, offset = 0x4, fixed_abs, tag = 'smem constant byte address 0x4 - core index']
  #allocation1 [shape = 'u32[144,128]{1,0:T(1,128)}', space=vmem, size = 0x12000, scoped, tag = 'internal scratch']
  %s0 = inlined_call_operand.hbm [shape: f32[16,64], index: 0, kind: input, shape index: {}]
  %s1 = inlined_call_operand.hbm [shape: f32[16,32], index: 1, kind: input, shape index: {}]
  %s2 = inlined_call_operand.hbm [shape: f32[8,32], index: 2, kind: output, shape index: {}]
  %s3 = sld [smem:[#allocation0]]
  $region26: #{tpu_custom_call.1} parent=0
    _
  %s5 = ssub.s32 1, %s3
  %s6 = scalar_select 0, %s5, %s3
  $region1: #{tpu_custom_call.1} parent=0
    #allocation2 [shape = 'u8[8192]{0}', space=vmem, size = 0x2000, scoped, tag = 'input window, operand 0, single buffered']
    #allocation3 [shape = 's32[1]{0}', space=sflag, size = 0x4, scoped, tag = 'scoped memory for tpu_custom_call.1']
    #allocation4 [shape = 's32[1]{0}', space=sflag, size = 0x4, scoped, tag = 'scoped memory for tpu_custom_call.1']
    #allocation5 [shape = 'u8[8192]{0}', space=vmem, size = 0x2000, scoped, tag = 'input window, operand 1, single buffered']
    #allocation6 [shape = 's32[1]{0}', space=sflag, size = 0x4, scoped, tag = 'scoped memory for tpu_custom_call.1']
    #allocation7 [shape = 'u8[4096]{0}', space=vmem, size = 0x1000, scoped, tag = 'output window, operand 0, single buffered']
    %7 = vsyncpa [#allocation3], 0
    %8 = vsyncpa [#allocation6], 0
    %9 = vsyncpa [#allocation4], 0
    // Predicated region
    $region2: #{tpu_custom_call.1} parent=1 // pred_check
      _
    $region3: #{tpu_custom_call.1} parent=1 // pred_check_branch
      %11 = sbr.rel (0) target = $region5
    $region4: #{tpu_custom_call.1} parent=1 // pred_region
      %s13 = ssub.s32 256, 256
      %14 = vsyncadd [#allocation3], %s13
      %s15 = sshll.u32 [#allocation2], 4
      %s16 = int_to_ptr.vmem [resolvable:$true] %s15
      %21 = dma.hbm_to_vmem [thread:$0]  %s0, 256, %s16, [#allocation3], 128, 128, 8
    $region5: #{tpu_custom_call.1} parent=1 // pred_fallthru
      _
    // Predicated region
    $region6: #{tpu_custom_call.1} parent=1 // pred_check
      _
    $region7: #{tpu_custom_call.1} parent=1 // pred_check_branch
      %23 = sbr.rel (0) target = $region9
    $region8: #{tpu_custom_call.1} parent=1 // pred_region
      %s25 = ssub.s32 256, 256
      %26 = vsyncadd [#allocation6], %s25
      %s27 = sshll.u32 [#allocation5], 4
      %s28 = int_to_ptr.vmem [resolvable:$true] %s27
      %33 = dma.hbm_to_vmem [thread:$0]  %s1, 256, %s28, [#allocation6], 128, 128, 8
    $region9: #{tpu_custom_call.1} parent=1 // pred_fallthru
      _
    // Predicated region
    $region10: #{tpu_custom_call.1} parent=1 // pred_check
      _
    $region11: #{tpu_custom_call.1} parent=1 // pred_check_branch
      %35 = sbr.rel (0) target = $region13
    $region12: #{tpu_custom_call.1} parent=1 // pred_region
      %36 = dma.done [#allocation3], 256
    $region13: #{tpu_custom_call.1} parent=1 // pred_fallthru
      _
    // Predicated region
    $region14: #{tpu_custom_call.1} parent=1 // pred_check
      _
    $region15: #{tpu_custom_call.1} parent=1 // pred_check_branch
      %38 = sbr.rel (0) target = $region17
    $region16: #{tpu_custom_call.1} parent=1 // pred_region
      %39 = dma.done [#allocation6], 256
    $region17: #{tpu_custom_call.1} parent=1 // pred_fallthru
      _
    %v40 = vld [vmem:[#allocation2] sm:$0xff]
    %v41 = vld [vmem:[#allocation2 + $0x8] sm:$0xff]
    %v42 = vld [vmem:[#allocation5] sm:$0xff]
    %v43 = vld [vmem:[#allocation5 + $0x8] sm:$0xff]
    %v44 = vmax.f32 %v40, 1e-06
    %v45 = vmax.f32 %v41, 1e-06
    %v46 = vlog2.pop %v44
    %v47 = vmul.f32 %v46, 0.6931472
    %v48 = vlog2.pop %v45
    %v49 = vmul.f32 %v48, 0.6931472
    %v50 = vadd.f32 %v47, 0.6931472
    %v51 = vadd.f32 %v49, 0.6931472
    %v52 = vsub.f32 %v42, %v40
    %v53 = vsub.f32 %v43, %v41
    %v54 = vand.u32 2147483647, %v52
    %v55 = vand.u32 2147483647, %v53
    %v56 = vrcp.pop %v44
    %v57 = vrcp.pop %v45
    %60 = vrot.lane.b32.xlu0 %v56, 96
    %v61 = vpop.permute.xlu0 %60
    %62 = vrot.lane.b32.xlu0 %v57, 96
    %v63 = vpop.permute.xlu0 %62
    %v66 = vmul.f32 %v54, %v61
    %v67 = vmul.f32 %v55, %v63
    %70 = vrot.lane.b32.xlu0 %v66, 32
    %v71 = vpop.permute.xlu0 %70
    %72 = vrot.lane.b32.xlu0 %v67, 32
    %v73 = vpop.permute.xlu0 %72
    %v76 = vadd.f32 %v50, %v71
    %v77 = vadd.f32 %v51, %v73
    %vm78 = vcmask 523520
    %v79 = vsel %vm78, %v76, 0.0
    %v80 = vsel %vm78, %v77, 0.0
    %v81 = vadd.f32 %v79, %v80
    %83 = vrot.lane.b32.xlu0 %v81, 96
    %v84 = vpop.permute.xlu0 %83
    %vm86 = vcmask 261120
    %87 = vst.msk [vmem:[#allocation7] sm:$0xff] %vm86, %v84
    // Predicated region
    $region18: #{tpu_custom_call.1} parent=1 // pred_check
      _
    $region19: #{tpu_custom_call.1} parent=1 // pred_check_branch
      %89 = sbr.rel (0) target = $region21
    $region20: #{tpu_custom_call.1} parent=1 // pred_region
      %s91 = ssub.s32 128, 128
      %92 = vsyncadd [#allocation4], %s91
      %s94 = sshll.u32 [#allocation7], 4
      %s95 = int_to_ptr.vmem [resolvable:$true] %s94
      %97 = dma.vmem_to_hbm [thread:$0]  %s95, 128, %s2, [#allocation4]
    $region21: #{tpu_custom_call.1} parent=1 // pred_fallthru
      _
    // Predicated region
    $region22: #{tpu_custom_call.1} parent=1 // pred_check
      _
    $region23: #{tpu_custom_call.1} parent=1 // pred_check_branch
      %99 = sbr.rel (0) target = $region25
    $region24: #{tpu_custom_call.1} parent=1 // pred_region
      %100 = dma.done [#allocation4], 128
    $region25: #{tpu_custom_call.1} parent=1 // pred_fallthru
      _
    %101 = vsyncpa [#allocation3], 1
    %102 = vsyncpa [#allocation6], 1
    %103 = vsyncpa [#allocation4], 1

</llo_original>
